<compile_context>
chip_gen: v5e
topology: v5e:2x2
jax: 0.10.0
libtpu: 0.0.40
codegen_flags: <defaults>
</compile_context>

<pallas_src>
import functools

import jax
import jax.numpy as jnp
from jax import lax
from jax.experimental import pallas as pl
from jax.experimental.pallas import tpu as pltpu

LANES = 128
SUBLANES = 8


def _smape_kernel(w_ref, labels_ref, preds_ref, out_ref, *,
                  block_rows, valid_rows, mask_rows):
    labels = labels_ref[...]            # (br, 128) f32
    preds = preds_ref[...]              # (br, 128) f32

    w = w_ref[0]
    two_w = w * 2.0
    four_w = w * 4.0

    # mask folded with the constant *2:
    #   labels <= 0  -> 2 * (2*w) = 4w
    #   labels <= 20 -> 2 * w     = 2w
    #   otherwise    -> 2 * 1     = 2
    mask2 = jnp.where(
        labels <= 0.0,
        four_w,
        jnp.where(labels <= 20.0, two_w, jnp.float32(2.0)),
    )

    num = jnp.abs(preds - labels)
    denom = jnp.abs(preds) + jnp.abs(labels)
    val = mask2 * num * pl.reciprocal(denom, approx=True)   # (br, 128)

    if mask_rows:
        # Ragged last block: rows >= valid_rows hold unspecified DMA padding.
        # A select (not arithmetic) zeroes them, so garbage NaN/Inf cannot
        # propagate.  This branch is statically elided when the grid divides.
        row0 = pl.program_id(0) * block_rows
        row_ids = row0 + lax.broadcasted_iota(jnp.int32, (block_rows, LANES), 0)
        val = jnp.where(row_ids < valid_rows, val, jnp.float32(0.0))

    # Fold rows onto a single (8, 128) vreg with plain VPU adds; the single
    # cross-lane/sublane reduction happens outside the kernel.
    partial = jnp.sum(val.reshape(block_rows // SUBLANES, SUBLANES, LANES), axis=0)
    out_ref[...] = partial.reshape(1, SUBLANES, LANES)


def smape_loss(labels, preds, w, *, block_rows=2048):
    """Pallas implementation of SMAPELoss.forward(labels, preds, w)."""
    assert labels.shape == preds.shape
    labels = jnp.asarray(labels, jnp.float32).reshape(-1)
    preds = jnp.asarray(preds, jnp.float32).reshape(-1)

    total_n = labels.shape[0]

    # Rows of 128 lanes, rounded up to a multiple of 8 sublanes.  Padding (a
    # full-array copy) only happens when total_n is not already a multiple of
    # 1024; block granularity never forces extra padding.
    rows8 = -(-total_n // (SUBLANES * LANES)) * SUBLANES
    padded_n = rows8 * LANES
    pad = padded_n - total_n
    if pad:
        # labels = preds = 1.0 contributes exactly 0 to the sum.
        labels = jnp.concatenate([labels, jnp.ones((pad,), jnp.float32)])
        preds = jnp.concatenate([preds, jnp.ones((pad,), jnp.float32)])

    br = min(block_rows, rows8)
    br = -(-br // SUBLANES) * SUBLANES                # multiple of 8
    grid_len = -(-rows8 // br)                        # ceil -> ragged last block OK
    mask_rows = (grid_len * br) != rows8              # static (trace-time) flag

    labels2d = labels.reshape(rows8, LANES)
    preds2d = preds.reshape(rows8, LANES)
    w_arr = jnp.asarray([w], dtype=jnp.float32)

    kernel = functools.partial(
        _smape_kernel, block_rows=br, valid_rows=rows8, mask_rows=mask_rows)

    partials = pl.pallas_call(
        kernel,
        out_shape=jax.ShapeDtypeStruct((grid_len, SUBLANES, LANES), jnp.float32),
        grid_spec=pltpu.PrefetchScalarGridSpec(
            num_scalar_prefetch=0,
            grid=(grid_len,),
            in_specs=[
                pl.BlockSpec(memory_space=pltpu.MemorySpace.SMEM),       # w
                pl.BlockSpec((br, LANES), lambda i: (i, 0)),             # labels
                pl.BlockSpec((br, LANES), lambda i: (i, 0)),             # preds
            ],
            out_specs=pl.BlockSpec((1, SUBLANES, LANES), lambda i: (i, 0, 0)),
        ),
        compiler_params=pltpu.CompilerParams(
            dimension_semantics=("parallel",),
        ),
    )(w_arr, labels2d, preds2d)

    # Tiny final reduction + mean over the true element count.
    return jnp.sum(partials) / jnp.float32(total_n)


def smape_loss_ref(labels, preds, w):
    labels = labels.astype(jnp.float32)
    preds = preds.astype(jnp.float32)
    mask = jnp.ones_like(labels)
    mask = jnp.where(labels <= 20.0, w, mask)
    mask = jnp.where(labels <= 0.0, w * 2.0, mask)
    return jnp.mean(
        mask * 2.0 * jnp.abs(preds - labels) / (jnp.abs(preds) + jnp.abs(labels))
    )


if __name__ == "__main__":
    key = jax.random.PRNGKey(0)
    k1, k2 = jax.random.split(key)
    w = 0.5

    # Small NCHW-shaped inputs (elementwise loss; layout handled in wrapper).
    shape = (2, 4, 16, 16)
    # Labels span negative / [0, 20] / >20 so all three mask branches fire.
    labels = jax.random.uniform(k1, shape, jnp.float32, minval=-10.0, maxval=50.0)
    preds = jax.random.uniform(k2, shape, jnp.float32, minval=0.1, maxval=60.0)

    out = jax.block_until_ready(smape_loss(labels, preds, w))
    ref = smape_loss_ref(labels, preds, w)
    # approx EUP reciprocal -> slightly looser tolerance than exact divide.
    assert jnp.allclose(out, ref, rtol=2e-3, atol=1e-6), (out, ref)

    # Exercise the padding path AND the ragged-last-block (in-kernel row mask)
    # path: 3840 elements -> 32 rows; forced block of 24 rows -> 2 blocks,
    # second block ragged.
    k3, k4 = jax.random.split(k2)
    shape2 = (3, 5, 16, 16)
    labels2 = jax.random.uniform(k3, shape2, jnp.float32, minval=-10.0, maxval=50.0)
    preds2 = jax.random.uniform(k4, shape2, jnp.float32, minval=0.1, maxval=60.0)
    out2 = jax.block_until_ready(smape_loss(labels2, preds2, w, block_rows=24))
    ref2 = smape_loss_ref(labels2, preds2, w)
    assert jnp.allclose(out2, ref2, rtol=2e-3, atol=1e-6), (out2, ref2)

    print("KERNEL_OK")
</pallas_src>

<mosaic_0001>
module attributes {stable_mosaic.version = 11 : i64} {
  func.func @_smape_kernel(%arg0: i32, %arg1: memref<1xf32, #tpu.memory_space<smem>>, %arg2: memref<16x128xf32, #tpu.memory_space<vmem>>, %arg3: memref<16x128xf32, #tpu.memory_space<vmem>>, %arg4: memref<1x8x128xf32, #tpu.memory_space<vmem>>) attributes {dimension_semantics = [#tpu.dimension_semantics<parallel>], iteration_bounds = array<i64: 1>, scalar_prefetch = 0 : i64, scratch_operands = 0 : i64, tpu.core_type = #tpu.core_type<tc>, window_params = [{transform_indices = @transform_0, window_bounds = array<i64: 1>}, {transform_indices = @transform_1, window_bounds = array<i64: 16, 128>}, {transform_indices = @transform_2, window_bounds = array<i64: 16, 128>}, {transform_indices = @transform_3, window_bounds = array<i64: 1, 8, 128>}]} {
    %c0 = arith.constant 0 : index
    %c0_0 = arith.constant 0 : index
    %0 = vector.load %arg2[%c0, %c0_0] : memref<16x128xf32, #tpu.memory_space<vmem>>, vector<16x128xf32>
    %c0_1 = arith.constant 0 : index
    %c0_2 = arith.constant 0 : index
    %1 = vector.load %arg3[%c0_1, %c0_2] : memref<16x128xf32, #tpu.memory_space<vmem>>, vector<16x128xf32>
    %c0_3 = arith.constant 0 : index
    %2 = memref.load %arg1[%c0_3] : memref<1xf32, #tpu.memory_space<smem>>
    %cst = arith.constant 2.000000e+00 : f32
    %3 = arith.mulf %2, %cst : f32
    %cst_4 = arith.constant 4.000000e+00 : f32
    %4 = arith.mulf %2, %cst_4 : f32
    %cst_5 = arith.constant 0.000000e+00 : f32
    %5 = vector.broadcast %cst_5 : f32 to vector<16x128xf32>
    %6 = arith.cmpf ole, %0, %5 : vector<16x128xf32>
    %cst_6 = arith.constant 2.000000e+01 : f32
    %7 = vector.broadcast %cst_6 : f32 to vector<16x128xf32>
    %8 = arith.cmpf ole, %0, %7 : vector<16x128xf32>
    %cst_7 = arith.constant 2.000000e+00 : f32
    %9 = vector.broadcast %3 : f32 to vector<16x128xf32>
    %10 = vector.broadcast %cst_7 : f32 to vector<16x128xf32>
    %11 = arith.select %8, %9, %10 : vector<16x128xi1>, vector<16x128xf32>
    %12 = vector.broadcast %4 : f32 to vector<16x128xf32>
    %13 = arith.select %6, %12, %11 : vector<16x128xi1>, vector<16x128xf32>
    %14 = arith.subf %1, %0 : vector<16x128xf32>
    %15 = math.absf %14 : vector<16x128xf32>
    %16 = math.absf %1 : vector<16x128xf32>
    %17 = math.absf %0 : vector<16x128xf32>
    %18 = arith.addf %16, %17 : vector<16x128xf32>
    %19 = arith.mulf %13, %15 : vector<16x128xf32>
    %20 = tpu.reciprocal %18 {approx = true} : vector<16x128xf32> -> vector<16x128xf32>
    %21 = arith.mulf %19, %20 : vector<16x128xf32>
    %22 = vector.shape_cast %21 : vector<16x128xf32> to vector<2x8x128xf32>
    %cst_8 = arith.constant dense<0.000000e+00> : vector<8x128xf32>
    %23 = vector.multi_reduction <add>, %22, %cst_8 [0] : vector<2x8x128xf32> to vector<8x128xf32>
    %24 = vector.shape_cast %23 : vector<8x128xf32> to vector<1x8x128xf32>
    %c0_9 = arith.constant 0 : index
    %c0_10 = arith.constant 0 : index
    %c0_11 = arith.constant 0 : index
    %25 = vector.load %arg4[%c0_9, %c0_10, %c0_11] : memref<1x8x128xf32, #tpu.memory_space<vmem>>, vector<1x8x128xf32>
    tpu.vector_store %arg4[%c0_9, %c0_10, %c0_11], %24 {strides = array<i32>} : memref<1x8x128xf32, #tpu.memory_space<vmem>>, vector<1x8x128xf32>,
    return
  }
  func.func @transform_0(%arg0: i32) -> i32 {
    %c0_i32 = arith.constant 0 : i32
    %c0_i32_0 = arith.constant 0 : i32
    return %c0_i32 : i32
  }
  func.func @transform_1(%arg0: i32) -> (i32, i32) {
    %c0_i32 = arith.constant 0 : i32
    %c0_i32_0 = arith.constant 0 : i32
    return %arg0, %c0_i32 : i32, i32
  }
  func.func @transform_2(%arg0: i32) -> (i32, i32) {
    %c0_i32 = arith.constant 0 : i32
    %c0_i32_0 = arith.constant 0 : i32
    return %arg0, %c0_i32 : i32, i32
  }
  func.func @transform_3(%arg0: i32) -> (i32, i32, i32) {
    %c0_i32 = arith.constant 0 : i32
    %c0_i32_0 = arith.constant 0 : i32
    %c0_i32_1 = arith.constant 0 : i32
    return %arg0, %c0_i32, %c0_i32_0 : i32, i32, i32
  }
}

</mosaic_0001>

<llo_original>
// kernel: tpu_custom_call.1
$region0: #{tpu_custom_call.1}
  #allocation0 [shape = 'u32[]', space=smem, size = 0x4, offset = 0x4, fixed_abs, tag = 'smem constant byte address 0x4 - core index']
  #allocation1 [shape = 'u32[72,128]{1,0:T(1,128)}', space=vmem, size = 0x9000, scoped, tag = 'internal scratch']
  #allocation2 [shape = 'f32[1]{0:T(128)S(6)}', space=smem, size = 0x200, scoped, tag = 'scoped memory for tpu_custom_call.1']
  %s0 = inlined_call_operand.<no memory space> [shape: f32[1], index: 0, kind: input, shape index: {}]
  %s1 = inlined_call_operand.hbm [shape: f32[16,128], index: 1, kind: input, shape index: {}]
  %s2 = inlined_call_operand.hbm [shape: f32[16,128], index: 2, kind: input, shape index: {}]
  %s3 = inlined_call_operand.hbm [shape: f32[1,8,128], index: 3, kind: output, shape index: {}]
  %s4 = sld [smem:[#allocation0]]
  $region30: #{tpu_custom_call.1} parent=0
    _
  %s6 = ssub.s32 1, %s4
  %s7 = scalar_select 0, %s6, %s4
  %8 = sst [smem:[#allocation2]] %s0
  $region1: #{tpu_custom_call.1} parent=0
    #allocation3 [shape = 'u8[8192]{0}', space=vmem, size = 0x2000, scoped, tag = 'input window, operand 1, single buffered']
    #allocation4 [shape = 's32[1]{0}', space=sflag, size = 0x4, scoped, tag = 'scoped memory for tpu_custom_call.1']
    #allocation5 [shape = 's32[1]{0}', space=sflag, size = 0x4, scoped, tag = 'scoped memory for tpu_custom_call.1']
    #allocation6 [shape = 'u8[8192]{0}', space=vmem, size = 0x2000, scoped, tag = 'input window, operand 2, single buffered']
    #allocation7 [shape = 's32[1]{0}', space=sflag, size = 0x4, scoped, tag = 'scoped memory for tpu_custom_call.1']
    #allocation8 [shape = 'u8[4096]{0}', space=vmem, size = 0x1000, scoped, tag = 'output window, operand 0, single buffered']
    %9 = vsyncpa [#allocation4], 0
    %10 = vsyncpa [#allocation7], 0
    %11 = vsyncpa [#allocation5], 0
    // Predicated region
    $region2: #{tpu_custom_call.1} parent=1 // pred_check
      _
    $region3: #{tpu_custom_call.1} parent=1 // pred_check_branch
      %13 = sbr.rel (0) target = $region5
    $region4: #{tpu_custom_call.1} parent=1 // pred_region
      _
    $region5: #{tpu_custom_call.1} parent=1 // pred_fallthru
      _
    // Predicated region
    $region6: #{tpu_custom_call.1} parent=1 // pred_check
      _
    $region7: #{tpu_custom_call.1} parent=1 // pred_check_branch
      %15 = sbr.rel (0) target = $region9
    $region8: #{tpu_custom_call.1} parent=1 // pred_region
      %17 = vsyncadd [#allocation4], 0
      %s18 = sshll.u32 %s1, 4
      %s19 = int_to_ptr.hbm [resolvable:$true] %s18
      %s20 = sshll.u32 [#allocation3], 4
      %s21 = int_to_ptr.vmem [resolvable:$true] %s20
      %26 = dma.hbm_to_vmem [thread:$0]  %s19, 256, %s21, [#allocation4], 128, 128, 8
    $region9: #{tpu_custom_call.1} parent=1 // pred_fallthru
      _
    // Predicated region
    $region10: #{tpu_custom_call.1} parent=1 // pred_check
      _
    $region11: #{tpu_custom_call.1} parent=1 // pred_check_branch
      %28 = sbr.rel (0) target = $region13
    $region12: #{tpu_custom_call.1} parent=1 // pred_region
      %30 = vsyncadd [#allocation7], 0
      %s31 = sshll.u32 %s2, 4
      %s32 = int_to_ptr.hbm [resolvable:$true] %s31
      %s33 = sshll.u32 [#allocation6], 4
      %s34 = int_to_ptr.vmem [resolvable:$true] %s33
      %39 = dma.hbm_to_vmem [thread:$0]  %s32, 256, %s34, [#allocation7], 128, 128, 8
    $region13: #{tpu_custom_call.1} parent=1 // pred_fallthru
      _
    // Predicated region
    $region14: #{tpu_custom_call.1} parent=1 // pred_check
      _
    $region15: #{tpu_custom_call.1} parent=1 // pred_check_branch
      %41 = sbr.rel (0) target = $region17
    $region16: #{tpu_custom_call.1} parent=1 // pred_region
      %43 = dma.done [#allocation4], 256
    $region17: #{tpu_custom_call.1} parent=1 // pred_fallthru
      _
    // Predicated region
    $region18: #{tpu_custom_call.1} parent=1 // pred_check
      _
    $region19: #{tpu_custom_call.1} parent=1 // pred_check_branch
      %45 = sbr.rel (0) target = $region21
    $region20: #{tpu_custom_call.1} parent=1 // pred_region
      %47 = dma.done [#allocation7], 256
    $region21: #{tpu_custom_call.1} parent=1 // pred_fallthru
      _
    %v48 = vld [vmem:[#allocation3] sm:$0xff]
    %v49 = vld [vmem:[#allocation3 + $0x8] sm:$0xff]
    %v50 = vld [vmem:[#allocation6] sm:$0xff]
    %v51 = vld [vmem:[#allocation6 + $0x8] sm:$0xff]
    %s52 = sld [smem:[#allocation2]]
    %s53 = smul.f32 %s52, 2.0
    %s54 = smul.f32 %s52, 4.0
    %vm55 = vcmp.le.f32.partialorder %v48, 0.0
    %vm56 = vcmp.le.f32.partialorder %v49, 0.0
    %vm57 = vcmp.le.f32.partialorder %v48, 20.0
    %vm58 = vcmp.le.f32.partialorder %v49, 20.0
    %v59 = vstv %s53
    %v60 = vsel %vm57, %v59, 2.0
    %v61 = vsel %vm58, %v59, 2.0
    %v62 = vstv %s54
    %v63 = vsel %vm55, %v62, %v60
    %v64 = vsel %vm56, %v62, %v61
    %v65 = vsub.f32 %v50, %v48
    %v66 = vsub.f32 %v51, %v49
    %v67 = vand.u32 2147483647, %v65
    %v68 = vand.u32 2147483647, %v66
    %v69 = vand.u32 2147483647, %v50
    %v70 = vand.u32 2147483647, %v51
    %v71 = vand.u32 2147483647, %v48
    %v72 = vand.u32 2147483647, %v49
    %v73 = vadd.f32 %v69, %v71
    %v74 = vadd.f32 %v70, %v72
    %v75 = vmul.f32 %v63, %v67
    %v76 = vmul.f32 %v64, %v68
    %v77 = vrcp.pop %v73
    %v78 = vrcp.pop %v74
    %v79 = vmul.f32 %v75, %v77
    %v80 = vmul.f32 %v76, %v78
    %v81 = vadd.f32 %v79, %v80
    %82 = vst [vmem:[#allocation8] sm:$0xff] %v81
    // Predicated region
    $region22: #{tpu_custom_call.1} parent=1 // pred_check
      _
    $region23: #{tpu_custom_call.1} parent=1 // pred_check_branch
      %84 = sbr.rel (0) target = $region25
    $region24: #{tpu_custom_call.1} parent=1 // pred_region
      %86 = vsyncadd [#allocation5], 0
      %s88 = sshll.u32 [#allocation8], 4
      %s89 = int_to_ptr.vmem [resolvable:$true] %s88
      %s90 = sshll.u32 %s3, 4
      %s91 = int_to_ptr.hbm [resolvable:$true] %s90
      %93 = dma.vmem_to_hbm [thread:$0]  %s89, 128, %s91, [#allocation5]
    $region25: #{tpu_custom_call.1} parent=1 // pred_fallthru
      _
    // Predicated region
    $region26: #{tpu_custom_call.1} parent=1 // pred_check
      _
    $region27: #{tpu_custom_call.1} parent=1 // pred_check_branch
      %95 = sbr.rel (0) target = $region29
    $region28: #{tpu_custom_call.1} parent=1 // pred_region
      %97 = dma.done [#allocation5], 128
    $region29: #{tpu_custom_call.1} parent=1 // pred_fallthru
      _
    %98 = vsyncpa [#allocation4], 1
    %99 = vsyncpa [#allocation7], 1
    %100 = vsyncpa [#allocation5], 1

</llo_original>
